<compile_context>
chip_gen: v7x
topology: tpu7x:2x2x1
jax: 0.10.0
libtpu: 0.0.40
codegen_flags: <defaults>
</compile_context>

<pallas_src>
import functools

import jax
import jax.numpy as jnp
from jax.experimental import pallas as pl
from jax.experimental.pallas import tpu as pltpu

_INV_SQRT2 = 0.7071067811865476


def _round_up(x: int, m: int) -> int:
    return (x + m - 1) // m * m


def block_kernel(x_mm_ref, x_res_ref, wt_ref, b_ref, o_ref, acc_ref):
    """Grid = (M tiles, N tiles, K tiles); K is the reduction axis (last).

    x_mm_ref : (tm, tk)  input tile for the matmul          (block (i, k))
    x_res_ref: (tm, tn)  input tile for the residual add    (block (i, j))
    wt_ref   : (tk, tn)  pre-transposed weight tile W^T     (block (k, j))
    b_ref    : (1,  tn)  bias tile                          (block (0, j))
    o_ref    : (tm, tn)  output tile                        (block (i, j))
    acc_ref  : (tm, tn)  f32 accumulator scratch (VMEM)
    """
    k = pl.program_id(2)

    @pl.when(k == 0)
    def _init():
        acc_ref[...] = jnp.zeros_like(acc_ref)

    # Pure MXU accumulate: native-dtype operands, f32 accumulation.
    acc_ref[...] += jnp.dot(
        x_mm_ref[...], wt_ref[...], preferred_element_type=jnp.float32
    )

    @pl.when(k == pl.num_programs(2) - 1)
    def _finalize():
        # Bias + exact (erf) GELU + residual, once per output tile, in f32.
        y = acc_ref[...] + b_ref[...].astype(jnp.float32)
        g = 0.5 * y * (1.0 + jax.lax.erf(y * jnp.float32(_INV_SQRT2)))
        o_ref[...] = (x_res_ref[...].astype(jnp.float32) + g).astype(o_ref.dtype)


@functools.partial(jax.jit, static_argnames=("tm", "tn", "tk"))
def block_forward(x, w, b, *, tm=128, tn=128, tk=128):
    """x: (B, D); w: (D, D) in PyTorch (out, in) layout; b: (D,)."""
    B, D = x.shape
    out_dtype = x.dtype

    # Lane-dense padding: feature dim -> multiple of 128, batch -> multiple of 8.
    Dp = _round_up(D, 128)
    tn = min(tn, Dp)
    tk = min(tk, Dp)
    assert Dp % tn == 0 and Dp % tk == 0
    tm = min(tm, _round_up(B, 8))
    Bp = _round_up(B, tm)

    # Pre-transpose the weight once (D_out, D_in) -> (D_in, D_out): no in-kernel w.T.
    w_t = jnp.swapaxes(w, 0, 1)

    if Bp != B or Dp != D:
        x_p = jnp.pad(x, ((0, Bp - B), (0, Dp - D)))
        w_p = jnp.pad(w_t, ((0, Dp - D), (0, Dp - D)))
        b_p = jnp.pad(b, (0, Dp - D))
    else:
        x_p, w_p, b_p = x, w_t, b
    b2 = b_p.reshape(1, Dp)

    grid = (Bp // tm, Dp // tn, Dp // tk)

    itemsize = jnp.dtype(out_dtype).itemsize
    cost = pl.CostEstimate(
        flops=2 * Bp * Dp * Dp,
        transcendentals=Bp * Dp,                     # one erf/exp chain per element
        bytes_accessed=(2 * Bp * Dp + Dp * Dp + Dp + Bp * Dp) * itemsize,
    )

    out = pl.pallas_call(
        block_kernel,
        out_shape=jax.ShapeDtypeStruct((Bp, Dp), out_dtype),
        grid_spec=pltpu.PrefetchScalarGridSpec(
            num_scalar_prefetch=0,
            grid=grid,
            in_specs=[
                pl.BlockSpec((tm, tk), lambda i, j, k: (i, k)),   # x for matmul
                pl.BlockSpec((tm, tn), lambda i, j, k: (i, j)),   # x for residual
                pl.BlockSpec((tk, tn), lambda i, j, k: (k, j)),   # W^T
                pl.BlockSpec((1, tn), lambda i, j, k: (0, j)),    # bias
            ],
            out_specs=pl.BlockSpec((tm, tn), lambda i, j, k: (i, j)),
            scratch_shapes=[pltpu.VMEM((tm, tn), jnp.float32)],
        ),
        compiler_params=pltpu.CompilerParams(
            dimension_semantics=("parallel", "parallel", "arbitrary"),
        ),
        cost_estimate=cost,
    )(x_p, x_p, w_p, b2)

    if Bp != B or Dp != D:
        out = out[:B, :D]
    return out


def _reference(x, w, b):
    y = x @ w.T + b
    return x + 0.5 * y * (1.0 + jax.lax.erf(y / jnp.sqrt(2.0).astype(y.dtype)))


if __name__ == "__main__":
    key = jax.random.PRNGKey(0)

    # --- main test: lane-dense shapes, multi-tile grid -----------------------
    B, D = 64, 256
    kx, kw, kb, key = jax.random.split(key, 4)
    bound = 1.0 / (D ** 0.5)
    x = jax.random.normal(kx, (B, D), dtype=jnp.float32)
    w = jax.random.uniform(kw, (D, D), minval=-bound, maxval=bound, dtype=jnp.float32)
    b = jax.random.uniform(kb, (D,), minval=-bound, maxval=bound, dtype=jnp.float32)

    out = block_forward(x, w, b)
    jax.block_until_ready(out)
    assert jnp.allclose(out, _reference(x, w, b), atol=1e-5, rtol=1e-5), \
        "mismatch vs reference (main)"

    # --- secondary test: small D exercises the lane-padding path -------------
    B2, D2 = 8, 32
    kx, kw, kb, key = jax.random.split(key, 4)
    bound2 = 1.0 / (D2 ** 0.5)
    x2 = jax.random.normal(kx, (B2, D2), dtype=jnp.float32)
    w2 = jax.random.uniform(kw, (D2, D2), minval=-bound2, maxval=bound2, dtype=jnp.float32)
    b2 = jax.random.uniform(kb, (D2,), minval=-bound2, maxval=bound2, dtype=jnp.float32)

    out2 = block_forward(x2, w2, b2)
    jax.block_until_ready(out2)
    assert jnp.allclose(out2, _reference(x2, w2, b2), atol=1e-5, rtol=1e-5), \
        "mismatch vs reference (padded)"

    print("KERNEL_OK")
</pallas_src>

<mosaic_0001>
module attributes {stable_mosaic.version = 11 : i64} {
  func.func @block_kernel(%arg0: i32, %arg1: i32, %arg2: i32, %arg3: memref<64x128xf32, #tpu.memory_space<vmem>>, %arg4: memref<64x128xf32, #tpu.memory_space<vmem>>, %arg5: memref<128x128xf32, #tpu.memory_space<vmem>>, %arg6: memref<1x128xf32, #tpu.memory_space<vmem>>, %arg7: memref<64x128xf32, #tpu.memory_space<vmem>>, %arg8: memref<64x128xf32, #tpu.memory_space<vmem>>) attributes {dimension_semantics = [#tpu.dimension_semantics<parallel>, #tpu.dimension_semantics<parallel>, #tpu.dimension_semantics<arbitrary>], iteration_bounds = array<i64: 1, 2, 2>, scalar_prefetch = 0 : i64, scratch_operands = 1 : i64, tpu.core_type = #tpu.core_type<tc>, window_params = [{transform_indices = @transform_0, window_bounds = array<i64: 64, 128>}, {transform_indices = @transform_1, window_bounds = array<i64: 64, 128>}, {transform_indices = @transform_2, window_bounds = array<i64: 128, 128>}, {transform_indices = @transform_3, window_bounds = array<i64: 1, 128>}, {transform_indices = @transform_4, window_bounds = array<i64: 64, 128>}]} {
    %c0_i32 = arith.constant 0 : i32
    %0 = arith.cmpi eq, %arg2, %c0_i32 : i32
    %1 = arith.extui %0 : i1 to i32
    %c0_i32_0 = arith.constant 0 : i32
    %2 = arith.cmpi ne, %1, %c0_i32_0 : i32
    scf.if %2 {
      %cst_9 = arith.constant 0.000000e+00 : f32
      %12 = vector.broadcast %cst_9 : f32 to vector<64x128xf32>
      %c0_10 = arith.constant 0 : index
      %c0_11 = arith.constant 0 : index
      %13 = vector.load %arg8[%c0_10, %c0_11] : memref<64x128xf32, #tpu.memory_space<vmem>>, vector<64x128xf32>
      tpu.vector_store %arg8[%c0_10, %c0_11], %12 {strides = array<i32>} : memref<64x128xf32, #tpu.memory_space<vmem>>, vector<64x128xf32>,
    } else {
    }
    %c0 = arith.constant 0 : index
    %c0_1 = arith.constant 0 : index
    %3 = vector.load %arg8[%c0, %c0_1] : memref<64x128xf32, #tpu.memory_space<vmem>>, vector<64x128xf32>
    %c0_2 = arith.constant 0 : index
    %c0_3 = arith.constant 0 : index
    %4 = vector.load %arg3[%c0_2, %c0_3] : memref<64x128xf32, #tpu.memory_space<vmem>>, vector<64x128xf32>
    %c0_4 = arith.constant 0 : index
    %c0_5 = arith.constant 0 : index
    %5 = vector.load %arg5[%c0_4, %c0_5] : memref<128x128xf32, #tpu.memory_space<vmem>>, vector<128x128xf32>
    %cst = arith.constant dense<0.000000e+00> : vector<64x128xf32>
    %6 = tpu.matmul %4, %5, %cst {dimension_numbers = #tpu.dot_dimension_numbers<[1], [0], [0], [1], [0, 0, 1, 1], [], []>} : vector<64x128xf32>, vector<128x128xf32>, vector<64x128xf32> -> vector<64x128xf32>
    %7 = arith.addf %3, %6 : vector<64x128xf32>
    %c0_6 = arith.constant 0 : index
    %c0_7 = arith.constant 0 : index
    %8 = vector.load %arg8[%c0_6, %c0_7] : memref<64x128xf32, #tpu.memory_space<vmem>>, vector<64x128xf32>
    tpu.vector_store %arg8[%c0_6, %c0_7], %7 {strides = array<i32>} : memref<64x128xf32, #tpu.memory_space<vmem>>, vector<64x128xf32>,
    %c1_i32 = arith.constant 1 : i32
    %9 = arith.cmpi eq, %arg2, %c1_i32 : i32
    %10 = arith.extui %9 : i1 to i32
    %c0_i32_8 = arith.constant 0 : i32
    %11 = arith.cmpi ne, %10, %c0_i32_8 : i32
    scf.if %11 {
      %c0_9 = arith.constant 0 : index
      %c0_10 = arith.constant 0 : index
      %12 = vector.load %arg8[%c0_9, %c0_10] : memref<64x128xf32, #tpu.memory_space<vmem>>, vector<64x128xf32>
      %c0_11 = arith.constant 0 : index
      %c0_12 = arith.constant 0 : index
      %13 = vector.load %arg6[%c0_11, %c0_12] : memref<1x128xf32, #tpu.memory_space<vmem>>, vector<1x128xf32>
      %14 = vector.broadcast %13 : vector<1x128xf32> to vector<64x128xf32>
      %15 = arith.addf %12, %14 : vector<64x128xf32>
      %cst_13 = arith.constant 5.000000e-01 : f32
      %16 = vector.broadcast %cst_13 : f32 to vector<64x128xf32>
      %17 = arith.mulf %16, %15 : vector<64x128xf32>
      %cst_14 = arith.constant 0.707106769 : f32
      %18 = vector.broadcast %cst_14 : f32 to vector<64x128xf32>
      %19 = arith.mulf %15, %18 : vector<64x128xf32>
      %20 = math.erf %19 : vector<64x128xf32>
      %cst_15 = arith.constant 1.000000e+00 : f32
      %21 = vector.broadcast %cst_15 : f32 to vector<64x128xf32>
      %22 = arith.addf %21, %20 : vector<64x128xf32>
      %23 = arith.mulf %17, %22 : vector<64x128xf32>
      %c0_16 = arith.constant 0 : index
      %c0_17 = arith.constant 0 : index
      %24 = vector.load %arg4[%c0_16, %c0_17] : memref<64x128xf32, #tpu.memory_space<vmem>>, vector<64x128xf32>
      %25 = arith.addf %24, %23 : vector<64x128xf32>
      %c0_18 = arith.constant 0 : index
      %c0_19 = arith.constant 0 : index
      %26 = vector.load %arg7[%c0_18, %c0_19] : memref<64x128xf32, #tpu.memory_space<vmem>>, vector<64x128xf32>
      tpu.vector_store %arg7[%c0_18, %c0_19], %25 {strides = array<i32>} : memref<64x128xf32, #tpu.memory_space<vmem>>, vector<64x128xf32>,
    } else {
    }
    return
  }
  func.func @transform_0(%arg0: i32, %arg1: i32, %arg2: i32) -> (i32, i32) {
    %c0_i32 = arith.constant 0 : i32
    return %arg0, %arg2 : i32, i32
  }
  func.func @transform_1(%arg0: i32, %arg1: i32, %arg2: i32) -> (i32, i32) {
    %c0_i32 = arith.constant 0 : i32
    return %arg0, %arg1 : i32, i32
  }
  func.func @transform_2(%arg0: i32, %arg1: i32, %arg2: i32) -> (i32, i32) {
    %c0_i32 = arith.constant 0 : i32
    return %arg2, %arg1 : i32, i32
  }
  func.func @transform_3(%arg0: i32, %arg1: i32, %arg2: i32) -> (i32, i32) {
    %c0_i32 = arith.constant 0 : i32
    %c0_i32_0 = arith.constant 0 : i32
    return %c0_i32, %arg1 : i32, i32
  }
  func.func @transform_4(%arg0: i32, %arg1: i32, %arg2: i32) -> (i32, i32) {
    %c0_i32 = arith.constant 0 : i32
    return %arg0, %arg1 : i32, i32
  }
}

</mosaic_0001>

<llo_original>
// kernel: block_forward.1
$region0: #{block_forward.1}
  #allocation0 [shape = 'u32[]', space=smem, size = 0x4, offset = 0x4, fixed_abs, tag = 'smem constant byte address 0x4 - core index']
  #allocation1 [shape = 'u32[144,128]{1,0:T(1,128)}', space=vmem, size = 0x12000, scoped, tag = 'internal scratch']
  #allocation2 [shape = 'f32[64,128]{1,0:T(8,128)}', space=vmem, size = 0x8000, scoped, tag = 'scratch operand']
  %s0 = inlined_call_operand.vmem [shape: f32[64,256], index: 0, kind: input, shape index: {}, may-alias: {0,1}]
  %s1 = inlined_call_operand.vmem [shape: f32[64,256], index: 1, kind: input, shape index: {}, may-alias: {0,1}]
  %s2 = inlined_call_operand.vmem [shape: f32[256,256], index: 2, kind: input, shape index: {}]
  %s3 = inlined_call_operand.vmem [shape: f32[1,256], index: 3, kind: input, shape index: {}]
  %s4 = inlined_call_operand.hbm [shape: f32[64,256], index: 4, kind: output, shape index: {}]
  %s5 = sld [smem:[#allocation0]]
  $region171: #{block_forward.1} parent=0
    _
  %s7 = ssub.s32 1, %s5
  %s8 = scalar_select 0, %s7, %s5
  $region1: #{block_forward.1} parent=0
    #allocation3 [shape = 'u8[65536]{0}', space=vmem, size = 0x10000, scoped, tag = 'input window, operand 0']
    #allocation4 [shape = 'u8[65536]{0}', space=vmem, size = 0x10000, scoped, tag = 'input window, operand 1']
    #allocation5 [shape = 'u8[131072]{0}', space=vmem, size = 0x20000, scoped, tag = 'input window, operand 2']
    #allocation6 [shape = 'u8[65536]{0}', space=vmem, size = 0x10000, scoped, tag = 'output window, operand 0']
    #allocation7 [shape = 's32[2]{0}', space=sflag, size = 0x8, scoped, tag = 'scoped memory for block_forward.1']
    %9 = vsyncpa [#allocation7], 0
    %s10 = scalar_lea.sflag [#allocation7], 1
    %11 = vsyncpa %s10, 0
    loop: start=0, step=1, limit=6
    $region2: #{block_forward.1} parent=1 // loop_pre_header
      _
    $region3: #{block_forward.1} parent=1 // loop_header
      %s13 = sphi 0, %s17
      %p14 = scmp.ge.s32.totalorder %s13, 6
      %s20 = sphi 0, %s39
      %s21 = sphi 0, %s35
      %s22 = sphi 0, %s31
      %s23 = sphi 0, %s20
      %s24 = sphi 0, %s21
      %s25 = sphi 0, %s22
      %s26 = sphi 0, %s23
      %s27 = sphi 0, %s24
      %s28 = sphi 0, %s25
      %s44 = sphi 0, %s46
      %s47 = sphi 0, %s44
      %s48 = sphi 0, %s47
      %s64 = sphi 0, %s48
      %s72 = sphi 0, %s74
      %s75 = sphi 0, %s72
      %s76 = sphi 0, %s75
      %s92 = sphi 0, %s76
      %s100 = sphi 0, %s102
      %s103 = sphi 0, %s100
      %s104 = sphi 0, %s103
      %s120 = sphi 0, %s104
      %s126 = sphi 0, %s128
      %s129 = sphi 0, %s126
      %s130 = sphi 0, %s129
      %s146 = sphi 0, %s130
      %s154 = sphi 0, %s156
      %s157 = sphi 0, %s154
      %s158 = sphi 0, %s157
      %s174 = sphi 0, %s158
    $region4: #{block_forward.1} parent=1 // loop_header_branch
      %16 = sbr.rel (%p14) target = $region8
    $region5: #{block_forward.1} parent=1 // loop_body
      %s18 = ssub.s32 %s13, 1
      %s19 = ssub.s32 %s13, 2
      %s29 = sadd.s32 1, %s22
      %p30 = scmp.ge.s32.totalorder %s29, 2
      %s31 = scalar_select %p30, 0, %s29
      %s32 = sadd.s32 1, %s21
      %s33 = scalar_select %p30, %s32, %s21
      %p34 = scmp.ge.s32.totalorder %s33, 2
      %s35 = scalar_select %p34, 0, %s33
      %s36 = sadd.s32 1, %s20
      %s37 = scalar_select %p34, %s36, %s20
      %p38 = scmp.ge.s32.totalorder %s37, 1
      %s39 = scalar_select %p38, 0, %s37
      %s40 = ssub.s32 %s20, %s39
      %s41 = ssub.s32 %s22, %s31
      %s42 = sor.u32 %s40, %s41
      %p43 = scmp.eq.s32.totalorder %s42, 0
      %s45 = sadd.s32 %s44, 1
      %s46 = scalar_select %p43, %s44, %s45
      %p49 = pneg %p43
      %p50 = scmp.eq.s32.totalorder %s13, 3
      %p51 = por %p49, %p50
      %p52 = scmp.ne.s32.totalorder %s44, %s47
      %p53 = scmp.eq.s32.totalorder %s13, 0
      %p54 = por %p52, %p53
      %p55 = scmp.ne.s32.totalorder %s44, %s47
      %p56 = scmp.eq.s32.totalorder %s18, 3
      %p57 = por %p55, %p56
      %p58 = scmp.ne.s32.totalorder %s47, %s48
      %p59 = scmp.eq.s32.totalorder %s18, 0
      %p60 = por %p58, %p59
      %p61 = scmp.ne.s32.totalorder %s47, %s48
      %p62 = scmp.eq.s32.totalorder %s19, 3
      %p63 = por %p61, %p62
      %p65 = scmp.ne.s32.totalorder %s48, %s64
      %p66 = scmp.eq.s32.totalorder %s19, 0
      %p67 = por %p65, %p66
      %s68 = ssub.s32 %s20, %s39
      %s69 = ssub.s32 %s21, %s35
      %s70 = sor.u32 %s68, %s69
      %p71 = scmp.eq.s32.totalorder %s70, 0
      %s73 = sadd.s32 %s72, 1
      %s74 = scalar_select %p71, %s72, %s73
      %p77 = pneg %p71
      %p78 = scmp.eq.s32.totalorder %s13, 3
      %p79 = por %p77, %p78
      %p80 = scmp.ne.s32.totalorder %s72, %s75
      %p81 = scmp.eq.s32.totalorder %s13, 0
      %p82 = por %p80, %p81
      %p83 = scmp.ne.s32.totalorder %s72, %s75
      %p84 = scmp.eq.s32.totalorder %s18, 3
      %p85 = por %p83, %p84
      %p86 = scmp.ne.s32.totalorder %s75, %s76
      %p87 = scmp.eq.s32.totalorder %s18, 0
      %p88 = por %p86, %p87
      %p89 = scmp.ne.s32.totalorder %s75, %s76
      %p90 = scmp.eq.s32.totalorder %s19, 3
      %p91 = por %p89, %p90
      %p93 = scmp.ne.s32.totalorder %s76, %s92
      %p94 = scmp.eq.s32.totalorder %s19, 0
      %p95 = por %p93, %p94
      %s96 = ssub.s32 %s22, %s31
      %s97 = ssub.s32 %s21, %s35
      %s98 = sor.u32 %s96, %s97
      %p99 = scmp.eq.s32.totalorder %s98, 0
      %s101 = sadd.s32 %s100, 1
      %s102 = scalar_select %p99, %s100, %s101
      %p105 = pneg %p99
      %p106 = scmp.eq.s32.totalorder %s13, 3
      %p107 = por %p105, %p106
      %p108 = scmp.ne.s32.totalorder %s100, %s103
      %p109 = scmp.eq.s32.totalorder %s13, 0
      %p110 = por %p108, %p109
      %p111 = scmp.ne.s32.totalorder %s100, %s103
      %p112 = scmp.eq.s32.totalorder %s18, 3
      %p113 = por %p111, %p112
      %p114 = scmp.ne.s32.totalorder %s103, %s104
      %p115 = scmp.eq.s32.totalorder %s18, 0
      %p116 = por %p114, %p115
      %p117 = scmp.ne.s32.totalorder %s103, %s104
      %p118 = scmp.eq.s32.totalorder %s19, 3
      %p119 = por %p117, %p118
      %p121 = scmp.ne.s32.totalorder %s104, %s120
      %p122 = scmp.eq.s32.totalorder %s19, 0
      %p123 = por %p121, %p122
      %s124 = ssub.s32 %s21, %s35
      %p125 = scmp.eq.s32.totalorder %s124, 0
      %s127 = sadd.s32 %s126, 1
      %s128 = scalar_select %p125, %s126, %s127
      %p131 = pneg %p125
      %p132 = scmp.eq.s32.totalorder %s13, 3
      %p133 = por %p131, %p132
      %p134 = scmp.ne.s32.totalorder %s126, %s129
      %p135 = scmp.eq.s32.totalorder %s13, 0
      %p136 = por %p134, %p135
      %p137 = scmp.ne.s32.totalorder %s126, %s129
      %p138 = scmp.eq.s32.totalorder %s18, 3
      %p139 = por %p137, %p138
      %p140 = scmp.ne.s32.totalorder %s129, %s130
      %p141 = scmp.eq.s32.totalorder %s18, 0
      %p142 = por %p140, %p141
      %p143 = scmp.ne.s32.totalorder %s129, %s130
      %p144 = scmp.eq.s32.totalorder %s19, 3
      %p145 = por %p143, %p144
      %p147 = scmp.ne.s32.totalorder %s130, %s146
      %p148 = scmp.eq.s32.totalorder %s19, 0
      %p149 = por %p147, %p148
      %s150 = ssub.s32 %s20, %s39
      %s151 = ssub.s32 %s21, %s35
      %s152 = sor.u32 %s150, %s151
      %p153 = scmp.eq.s32.totalorder %s152, 0
      %s155 = sadd.s32 %s154, 1
      %s156 = scalar_select %p153, %s154, %s155
      %p159 = pneg %p153
      %p160 = scmp.eq.s32.totalorder %s13, 3
      %p161 = por %p159, %p160
      %p162 = scmp.ne.s32.totalorder %s154, %s157
      %p163 = scmp.eq.s32.totalorder %s13, 0
      %p164 = por %p162, %p163
      %p165 = scmp.ne.s32.totalorder %s154, %s157
      %p166 = scmp.eq.s32.totalorder %s18, 3
      %p167 = por %p165, %p166
      %p168 = scmp.ne.s32.totalorder %s157, %s158
      %p169 = scmp.eq.s32.totalorder %s18, 0
      %p170 = por %p168, %p169
      %p171 = scmp.ne.s32.totalorder %s157, %s158
      %p172 = scmp.eq.s32.totalorder %s19, 3
      %p173 = por %p171, %p172
      %p175 = scmp.ne.s32.totalorder %s158, %s174
      %p176 = scmp.eq.s32.totalorder %s19, 0
      %p177 = por %p175, %p176
      %p178 = scmp.le.s32.totalorder 1, %s13
      %p179 = scmp.lt.s32.totalorder %s13, 5
      %p180 = pnand %p178, %p179
      %p181 = pneg %p180
      // Predicated region
      $region9: #{block_forward.1} parent=5 // pred_check
        _
      $region10: #{block_forward.1} parent=5 // pred_check_branch
        %183 = sbr.rel (%p180) target = $region12
      $region11: #{block_forward.1} parent=5 // pred_region
        %s184 = ssub.s32 %s13, 1
      $region12: #{block_forward.1} parent=5 // pred_fallthru
        _
      %p185 = scmp.lt.s32.totalorder %s13, 4
      // Predicated region
      $region13: #{block_forward.1} parent=5 // pred_check
        %p186 = pneg %p185
      $region14: #{block_forward.1} parent=5 // pred_check_branch
        %188 = sbr.rel (%p186) target = $region16
      $region15: #{block_forward.1} parent=5 // pred_region
        // Predicated region
        $region17: #{block_forward.1} parent=15 // pred_check
          %p189 = pneg %p54
        $region18: #{block_forward.1} parent=15 // pred_check_branch
          %191 = sbr.rel (%p189) target = $region20
        $region19: #{block_forward.1} parent=15 // pred_region
          %s192 = sand.u32 %s44, 1
          %s193 = sand.u32 %s44, 1
          %s194 = smul.addr %s193, 64
          %s195 = scalar_lea.vmem [#allocation3], %s194
          %s196 = smul.u32 8, %s20
          %s197 = smul.addr %s196, 2
          %s198 = sadd.s32 %s22, %s197
          %s199 = smul.addr %s198, 8
          %s200 = scalar_lea.vmem %s0, %s199
          // Predicated region
          $region21: #{block_forward.1} parent=19 // pred_check
            _
          $region22: #{block_forward.1} parent=19 // pred_check_branch
            %202 = sbr.rel (0) target = $region24
          $region23: #{block_forward.1} parent=19 // pred_region
            // Predicated region
            $region25: #{block_forward.1} parent=23 // pred_check
              _
            $region26: #{block_forward.1} parent=23 // pred_check_branch
              %204 = sbr.rel (0) target = $region28
            $region27: #{block_forward.1} parent=23 // pred_region
              // Predicated region
              $region40: #{block_forward.1} parent=27 // pred_check
                _
              $region41: #{block_forward.1} parent=27 // pred_check_branch
                %233 = sbr.rel (0) target = $region43
              $region42: #{block_forward.1} parent=27 // pred_region
                loop: start=0, step=1, limit=1
                $region44: #{block_forward.1} parent=42 // loop_pre_header
                  _
                $region45: #{block_forward.1} parent=42 // loop_header
                  %s235 = sphi 0, %s239
                  %p236 = scmp.ge.s32.totalorder %s235, 1
                  %s240 = sphi %s200, %s200
                  %s241 = sphi %s195, %s195
                $region46: #{block_forward.1} parent=42 // loop_header_branch
                  %238 = sbr.rel (%p236) target = $region50
                $region47: #{block_forward.1} parent=42 // loop_body
                  %v242 = vld [vmem:[%s240] sm:$0xff]
                  %243 = vst [vmem:[%s241] sm:$0xff] %v242
                  %v244 = vld [vmem:[%s240 + $0x10] sm:$0xff]
                  %245 = vst [vmem:[%s241 + $0x8] sm:$0xff] %v244
                  %v246 = vld [vmem:[%s240 + $0x20] sm:$0xff]
                  %247 = vst [vmem:[%s241 + $0x10] sm:$0xff] %v246
                  %v248 = vld [vmem:[%s240 + $0x30] sm:$0xff]
                  %249 = vst [vmem:[%s241 + $0x18] sm:$0xff] %v248
                  %v250 = vld [vmem:[%s240 + $0x40] sm:$0xff]
                  %251 = vst [vmem:[%s241 + $0x20] sm:$0xff] %v250
                  %v252 = vld [vmem:[%s240 + $0x50] sm:$0xff]
                  %253 = vst [vmem:[%s241 + $0x28] sm:$0xff] %v252
                  %v254 = vld [vmem:[%s240 + $0x60] sm:$0xff]
                  %255 = vst [vmem:[%s241 + $0x30] sm:$0xff] %v254
                  %v256 = vld [vmem:[%s240 + $0x70] sm:$0xff]
                  %257 = vst [vmem:[%s241 + $0x38] sm:$0xff] %v256
                $region48: #{block_forward.1} parent=42 // loop_footer
                  %s239 = sadd.s32 1, %s235
                $region49: #{block_forward.1} parent=42 // loop_footer_branch
                  %234 = sbr.rel target = $region45
                $region50: #{block_forward.1} parent=42 // loop_exit
                  _
              $region43: #{block_forward.1} parent=27 // pred_fallthru
                _
              // Predicated region
              $region51: #{block_forward.1} parent=27 // pred_check
                _
              $region52: #{block_forward.1} parent=27 // pred_check_branch
                %259 = sbr.rel target = $region54
              $region53: #{block_forward.1} parent=27 // pred_region
                _
              $region54: #{block_forward.1} parent=27 // pred_fallthru
                _
            $region28: #{block_forward.1} parent=23 // pred_fallthru
              _
            // Predicated region
            $region29: #{block_forward.1} parent=23 // pred_check
              _
            $region30: #{block_forward.1} parent=23 // pred_check_branch
              %206 = sbr.rel target = $region32
            $region31: #{block_forward.1} parent=23 // pred_region
              loop: start=0, step=1, limit=1
              $region33: #{block_forward.1} parent=31 // loop_pre_header
                _
              $region34: #{block_forward.1} parent=31 // loop_header
                %s209 = sphi 0, %s213
                %p210 = scmp.ge.s32.totalorder %s209, 1
                %s214 = sphi %s200, %s200
                %s215 = sphi %s195, %s195
              $region35: #{block_forward.1} parent=31 // loop_header_branch
                %212 = sbr.rel (%p210) target = $region39
              $region36: #{block_forward.1} parent=31 // loop_body
                %v216 = vld [vmem:[%s214] sm:$0xff]
                %217 = vst [vmem:[%s215] sm:$0xff] %v216
                %v218 = vld [vmem:[%s214 + $0x10] sm:$0xff]
                %219 = vst [vmem:[%s215 + $0x8] sm:$0xff] %v218
                %v220 = vld [vmem:[%s214 + $0x20] sm:$0xff]
                %221 = vst [vmem:[%s215 + $0x10] sm:$0xff] %v220
                %v222 = vld [vmem:[%s214 + $0x30] sm:$0xff]
                %223 = vst [vmem:[%s215 + $0x18] sm:$0xff] %v222
                %v224 = vld [vmem:[%s214 + $0x40] sm:$0xff]
                %225 = vst [vmem:[%s215 + $0x20] sm:$0xff] %v224
                %v226 = vld [vmem:[%s214 + $0x50] sm:$0xff]
                %227 = vst [vmem:[%s215 + $0x28] sm:$0xff] %v226
                %v228 = vld [vmem:[%s214 + $0x60] sm:$0xff]
                %229 = vst [vmem:[%s215 + $0x30] sm:$0xff] %v228
                %v230 = vld [vmem:[%s214 + $0x70] sm:$0xff]
                %231 = vst [vmem:[%s215 + $0x38] sm:$0xff] %v230
              $region37: #{block_forward.1} parent=31 // loop_footer
                %s213 = sadd.s32 1, %s209
              $region38: #{block_forward.1} parent=31 // loop_footer_branch
                %208 = sbr.rel target = $region34
              $region39: #{block_forward.1} parent=31 // loop_exit
                _
            $region32: #{block_forward.1} parent=23 // pred_fallthru
              _
          $region24: #{block_forward.1} parent=19 // pred_fallthru
            _
          %260 = vnop
        $region20: #{block_forward.1} parent=15 // pred_fallthru
          _
        // Predicated region
        $region55: #{block_forward.1} parent=15 // pred_check
          %p261 = pneg %p82
        $region56: #{block_forward.1} parent=15 // pred_check_branch
          %263 = sbr.rel (%p261) target = $region58
        $region57: #{block_forward.1} parent=15 // pred_region
          %s264 = sand.u32 %s72, 1
          %s265 = sand.u32 %s72, 1
          %s266 = smul.addr %s265, 64
          %s267 = scalar_lea.vmem [#allocation4], %s266
          %s268 = smul.u32 8, %s20
          %s269 = smul.addr %s268, 2
          %s270 = sadd.s32 %s21, %s269
          %s271 = smul.addr %s270, 8
          %s272 = scalar_lea.vmem %s1, %s271
          // Predicated region
          $region59: #{block_forward.1} parent=57 // pred_check
            _
          $region60: #{block_forward.1} parent=57 // pred_check_branch
            %274 = sbr.rel (0) target = $region62
          $region61: #{block_forward.1} parent=57 // pred_region
            // Predicated region
            $region63: #{block_forward.1} parent=61 // pred_check
              _
            $region64: #{block_forward.1} parent=61 // pred_check_branch
              %276 = sbr.rel (0) target = $region66
            $region65: #{block_forward.1} parent=61 // pred_region
              // Predicated region
              $region78: #{block_forward.1} parent=65 // pred_check
                _
              $region79: #{block_forward.1} parent=65 // pred_check_branch
                %305 = sbr.rel (0) target = $region81
              $region80: #{block_forward.1} parent=65 // pred_region
                loop: start=0, step=1, limit=1
                $region82: #{block_forward.1} parent=80 // loop_pre_header
                  _
                $region83: #{block_forward.1} parent=80 // loop_header
                  %s307 = sphi 0, %s311
                  %p308 = scmp.ge.s32.totalorder %s307, 1
                  %s312 = sphi %s272, %s272
                  %s313 = sphi %s267, %s267
                $region84: #{block_forward.1} parent=80 // loop_header_branch
                  %310 = sbr.rel (%p308) target = $region88
                $region85: #{block_forward.1} parent=80 // loop_body
                  %v314 = vld [vmem:[%s312] sm:$0xff]
                  %315 = vst [vmem:[%s313] sm:$0xff] %v314
                  %v316 = vld [vmem:[%s312 + $0x10] sm:$0xff]
                  %317 = vst [vmem:[%s313 + $0x8] sm:$0xff] %v316
                  %v318 = vld [vmem:[%s312 + $0x20] sm:$0xff]
                  %319 = vst [vmem:[%s313 + $0x10] sm:$0xff] %v318
                  %v320 = vld [vmem:[%s312 + $0x30] sm:$0xff]
                  %321 = vst [vmem:[%s313 + $0x18] sm:$0xff] %v320
                  %v322 = vld [vmem:[%s312 + $0x40] sm:$0xff]
                  %323 = vst [vmem:[%s313 + $0x20] sm:$0xff] %v322
                  %v324 = vld [vmem:[%s312 + $0x50] sm:$0xff]
                  %325 = vst [vmem:[%s313 + $0x28] sm:$0xff] %v324
                  %v326 = vld [vmem:[%s312 + $0x60] sm:$0xff]
                  %327 = vst [vmem:[%s313 + $0x30] sm:$0xff] %v326
                  %v328 = vld [vmem:[%s312 + $0x70] sm:$0xff]
                  %329 = vst [vmem:[%s313 + $0x38] sm:$0xff] %v328
                $region86: #{block_forward.1} parent=80 // loop_footer
                  %s311 = sadd.s32 1, %s307
                $region87: #{block_forward.1} parent=80 // loop_footer_branch
                  %306 = sbr.rel target = $region83
                $region88: #{block_forward.1} parent=80 // loop_exit
                  _
              $region81: #{block_forward.1} parent=65 // pred_fallthru
                _
              // Predicated region
              $region89: #{block_forward.1} parent=65 // pred_check
                _
              $region90: #{block_forward.1} parent=65 // pred_check_branch
                %331 = sbr.rel target = $region92
              $region91: #{block_forward.1} parent=65 // pred_region
                _
              $region92: #{block_forward.1} parent=65 // pred_fallthru
                _
            $region66: #{block_forward.1} parent=61 // pred_fallthru
              _
            // Predicated region
            $region67: #{block_forward.1} parent=61 // pred_check
              _
            $region68: #{block_forward.1} parent=61 // pred_check_branch
              %278 = sbr.rel target = $region70
            $region69: #{block_forward.1} parent=61 // pred_region
              loop: start=0, step=1, limit=1
              $region71: #{block_forward.1} parent=69 // loop_pre_header
                _
              $region72: #{block_forward.1} parent=69 // loop_header
                %s281 = sphi 0, %s285
                %p282 = scmp.ge.s32.totalorder %s281, 1
                %s286 = sphi %s272, %s272
                %s287 = sphi %s267, %s267
              $region73: #{block_forward.1} parent=69 // loop_header_branch
                %284 = sbr.rel (%p282) target = $region77
              $region74: #{block_forward.1} parent=69 // loop_body
                %v288 = vld [vmem:[%s286] sm:$0xff]
                %289 = vst [vmem:[%s287] sm:$0xff] %v288
                %v290 = vld [vmem:[%s286 + $0x10] sm:$0xff]
                %291 = vst [vmem:[%s287 + $0x8] sm:$0xff] %v290
                %v292 = vld [vmem:[%s286 + $0x20] sm:$0xff]
                %293 = vst [vmem:[%s287 + $0x10] sm:$0xff] %v292
                %v294 = vld [vmem:[%s286 + $0x30] sm:$0xff]
                %295 = vst [vmem:[%s287 + $0x18] sm:$0xff] %v294
                %v296 = vld [vmem:[%s286 + $0x40] sm:$0xff]
                %297 = vst [vmem:[%s287 + $0x20] sm:$0xff] %v296
                %v298 = vld [vmem:[%s286 + $0x50] sm:$0xff]
                %299 = vst [vmem:[%s287 + $0x28] sm:$0xff] %v298
                %v300 = vld [vmem:[%s286 + $0x60] sm:$0xff]
                %301 = vst [vmem:[%s287 + $0x30] sm:$0xff] %v300
                %v302 = vld [vmem:[%s286 + $0x70] sm:$0xff]
                %303 = vst [vmem:[%s287 + $0x38] sm:$0xff] %v302
              $region75: #{block_forward.1} parent=69 // loop_footer
                %s285 = sadd.s32 1, %s281
              $region76: #{block_forward.1} parent=69 // loop_footer_branch
                %280 = sbr.rel target = $region72
              $region77: #{block_forward.1} parent=69 // loop_exit
                _
            $region70: #{block_forward.1} parent=61 // pred_fallthru
              _
          $region62: #{block_forward.1} parent=57 // pred_fallthru
            _
          %332 = vnop
        $region58: #{block_forward.1} parent=15 // pred_fallthru
          _
        // Predicated region
        $region93: #{block_forward.1} parent=15 // pred_check
          %p333 = pneg %p110
        $region94: #{block_forward.1} parent=15 // pred_check_branch
          %335 = sbr.rel (%p333) target = $region96
        $region95: #{block_forward.1} parent=15 // pred_region
          %s336 = sand.u32 %s100, 1
          %s337 = sand.u32 %s100, 1
          %s338 = smul.addr %s337, 128
          %s339 = scalar_lea.vmem [#allocation5], %s338
          %s340 = smul.u32 16, %s22
          %s341 = smul.addr %s340, 2
          %s342 = sadd.s32 %s21, %s341
          %s343 = smul.addr %s342, 8
          %s344 = scalar_lea.vmem %s2, %s343
          // Predicated region
          $region97: #{block_forward.1} parent=95 // pred_check
            _
          $region98: #{block_forward.1} parent=95 // pred_check_branch
            %346 = sbr.rel (0) target = $region100
          $region99: #{block_forward.1} parent=95 // pred_region
            // Predicated region
            $region101: #{block_forward.1} parent=99 // pred_check
              _
            $region102: #{block_forward.1} parent=99 // pred_check_branch
              %348 = sbr.rel (0) target = $region104
            $region103: #{block_forward.1} parent=99 // pred_region
              // Predicated region
              $region116: #{block_forward.1} parent=103 // pred_check
                _
              $region117: #{block_forward.1} parent=103 // pred_check_branch
                %393 = sbr.rel (0) target = $region119
              $region118: #{block_forward.1} parent=103 // pred_region
                loop: start=0, step=1, limit=1
                $region120: #{block_forward.1} parent=118 // loop_pre_header
                  _
                $region121: #{block_forward.1} parent=118 // loop_header
                  %s395 = sphi 0, %s399
                  %p396 = scmp.ge.s32.totalorder %s395, 1
                  %s400 = sphi %s344, %s344
                  %s401 = sphi %s339, %s339
                $region122: #{block_forward.1} parent=118 // loop_header_branch
                  %398 = sbr.rel (%p396) target = $region126
                $region123: #{block_forward.1} parent=118 // loop_body
                  %v402 = vld [vmem:[%s400] sm:$0xff]
                  %403 = vst [vmem:[%s401] sm:$0xff] %v402
                  %v404 = vld [vmem:[%s400 + $0x10] sm:$0xff]
                  %405 = vst [vmem:[%s401 + $0x8] sm:$0xff] %v404
                  %v406 = vld [vmem:[%s400 + $0x20] sm:$0xff]
                  %407 = vst [vmem:[%s401 + $0x10] sm:$0xff] %v406
                  %v408 = vld [vmem:[%s400 + $0x30] sm:$0xff]
                  %409 = vst [vmem:[%s401 + $0x18] sm:$0xff] %v408
                  %v410 = vld [vmem:[%s400 + $0x40] sm:$0xff]
                  %411 = vst [vmem:[%s401 + $0x20] sm:$0xff] %v410
                  %v412 = vld [vmem:[%s400 + $0x50] sm:$0xff]
                  %413 = vst [vmem:[%s401 + $0x28] sm:$0xff] %v412
                  %v414 = vld [vmem:[%s400 + $0x60] sm:$0xff]
                  %415 = vst [vmem:[%s401 + $0x30] sm:$0xff] %v414
                  %v416 = vld [vmem:[%s400 + $0x70] sm:$0xff]
                  %417 = vst [vmem:[%s401 + $0x38] sm:$0xff] %v416
                  %v418 = vld [vmem:[%s400 + $0x80] sm:$0xff]
                  %419 = vst [vmem:[%s401 + $0x40] sm:$0xff] %v418
                  %v420 = vld [vmem:[%s400 + $0x90] sm:$0xff]
                  %421 = vst [vmem:[%s401 + $0x48] sm:$0xff] %v420
                  %v422 = vld [vmem:[%s400 + $0xa0] sm:$0xff]
                  %423 = vst [vmem:[%s401 + $0x50] sm:$0xff] %v422
                  %v424 = vld [vmem:[%s400 + $0xb0] sm:$0xff]
                  %425 = vst [vmem:[%s401 + $0x58] sm:$0xff] %v424
                  %v426 = vld [vmem:[%s400 + $0xc0] sm:$0xff]
                  %427 = vst [vmem:[%s401 + $0x60] sm:$0xff] %v426
                  %v428 = vld [vmem:[%s400 + $0xd0] sm:$0xff]
                  %429 = vst [vmem:[%s401 + $0x68] sm:$0xff] %v428
                  %v430 = vld [vmem:[%s400 + $0xe0] sm:$0xff]
                  %431 = vst [vmem:[%s401 + $0x70] sm:$0xff] %v430
                  %v432 = vld [vmem:[%s400 + $0xf0] sm:$0xff]
                  %433 = vst [vmem:[%s401 + $0x78] sm:$0xff] %v432
                $region124: #{block_forward.1} parent=118 // loop_footer
                  %s399 = sadd.s32 1, %s395
                $region125: #{block_forward.1} parent=118 // loop_footer_branch
                  %394 = sbr.rel target = $region121
                $region126: #{block_forward.1} parent=118 // loop_exit
                  _
              $region119: #{block_forward.1} parent=103 // pred_fallthru
                _
              // Predicated region
              $region127: #{block_forward.1} parent=103 // pred_check
                _
              $region128: #{block_forward.1} parent=103 // pred_check_branch
                %435 = sbr.rel target = $region130
              $region129: #{block_forward.1} parent=103 // pred_region
                _
              $region130: #{block_forward.1} parent=103 // pred_fallthru
                _
            $region104: #{block_forward.1} parent=99 // pred_fallthru
              _
            // Predicated region
            $region105: #{block_forward.1} parent=99 // pred_check
              _
            $region106: #{block_forward.1} parent=99 // pred_check_branch
              %350 = sbr.rel target = $region108
            $region107: #{block_forward.1} parent=99 // pred_region
              loop: start=0, step=1, limit=1
              $region109: #{block_forward.1} parent=107 // loop_pre_header
                _
              $region110: #{block_forward.1} parent=107 // loop_header
                %s353 = sphi 0, %s357
                %p354 = scmp.ge.s32.totalorder %s353, 1
                %s358 = sphi %s344, %s344
                %s359 = sphi %s339, %s339
              $region111: #{block_forward.1} parent=107 // loop_header_branch
                %356 = sbr.rel (%p354) target = $region115
              $region112: #{block_forward.1} parent=107 // loop_body
                %v360 = vld [vmem:[%s358] sm:$0xff]
                %361 = vst [vmem:[%s359] sm:$0xff] %v360
                %v362 = vld [vmem:[%s358 + $0x10] sm:$0xff]
                %363 = vst [vmem:[%s359 + $0x8] sm:$0xff] %v362
                %v364 = vld [vmem:[%s358 + $0x20] sm:$0xff]
                %365 = vst [vmem:[%s359 + $0x10] sm:$0xff] %v364
                %v366 = vld [vmem:[%s358 + $0x30] sm:$0xff]
                %367 = vst [vmem:[%s359 + $0x18] sm:$0xff] %v366
                %v368 = vld [vmem:[%s358 + $0x40] sm:$0xff]
                %369 = vst [vmem:[%s359 + $0x20] sm:$0xff] %v368
                %v370 = vld [vmem:[%s358 + $0x50] sm:$0xff]
                %371 = vst [vmem:[%s359 + $0x28] sm:$0xff] %v370
                %v372 = vld [vmem:[%s358 + $0x60] sm:$0xff]
                %373 = vst [vmem:[%s359 + $0x30] sm:$0xff] %v372
                %v374 = vld [vmem:[%s358 + $0x70] sm:$0xff]
                %375 = vst [vmem:[%s359 + $0x38] sm:$0xff] %v374
                %v376 = vld [vmem:[%s358 + $0x80] sm:$0xff]
                %377 = vst [vmem:[%s359 + $0x40] sm:$0xff] %v376
                %v378 = vld [vmem:[%s358 + $0x90] sm:$0xff]
                %379 = vst [vmem:[%s359 + $0x48] sm:$0xff] %v378
                %v380 = vld [vmem:[%s358 + $0xa0] sm:$0xff]
                %381 = vst [vmem:[%s359 + $0x50] sm:$0xff] %v380
                %v382 = vld [vmem:[%s358 + $0xb0] sm:$0xff]
                %383 = vst [vmem:[%s359 + $0x58] sm:$0xff] %v382
                %v384 = vld [vmem:[%s358 + $0xc0] sm:$0xff]
                %385 = vst [vmem:[%s359 + $0x60] sm:$0xff] %v384
                %v386 = vld [vmem:[%s358 + $0xd0] sm:$0xff]
                %387 = vst [vmem:[%s359 + $0x68] sm:$0xff] %v386
                %v388 = vld [vmem:[%s358 + $0xe0] sm:$0xff]
                %389 = vst [vmem:[%s359 + $0x70] sm:$0xff] %v388
                %v390 = vld [vmem:[%s358 + $0xf0] sm:$0xff]
                %391 = vst [vmem:[%s359 + $0x78] sm:$0xff] %v390
              $region113: #{block_forward.1} parent=107 // loop_footer
                %s357 = sadd.s32 1, %s353
              $region114: #{block_forward.1} parent=107 // loop_footer_branch
                %352 = sbr.rel target = $region110
              $region115: #{block_forward.1} parent=107 // loop_exit
                _
            $region108: #{block_forward.1} parent=99 // pred_fallthru
              _
          $region100: #{block_forward.1} parent=95 // pred_fallthru
            _
          %436 = vnop
        $region96: #{block_forward.1} parent=15 // pred_fallthru
          _
        // Predicated region
        $region131: #{block_forward.1} parent=15 // pred_check
          %p437 = pneg %p136
        $region132: #{block_forward.1} parent=15 // pred_check_branch
          %439 = sbr.rel (%p437) target = $region134
        $region133: #{block_forward.1} parent=15 // pred_region
          %p440 = scmp.lt.s32.totalorder %s21, 1
          %s441 = scalar_select %p440, %s21, 1
          %s442 = scalar_lea.vmem %s3, %s441
        $region134: #{block_forward.1} parent=15 // pred_fallthru
          _
      $region16: #{block_forward.1} parent=5 // pred_fallthru
        _
      %p443 = scmp.le.s32.totalorder 1, %s13
      %p444 = scmp.lt.s32.totalorder %s13, 5
      %p445 = pnand %p443, %p444
      %p446 = pneg %p445
      // Predicated region
      $region135: #{block_forward.1} parent=5 // pred_check
        _
      $region136: #{block_forward.1} parent=5 // pred_check_branch
        %448 = sbr.rel (%p445) target = $region138
      $region137: #{block_forward.1} parent=5 // pred_region
        %s449 = ssub.s32 %s13, 1
        %s450 = sand.u32 %s47, 1
        %s451 = sand.u32 %s47, 1
        %s452 = smul.addr %s451, 64
        %s453 = scalar_lea.vmem [#allocation3], %s452
        // Predicated region
        $region139: #{block_forward.1} parent=137 // pred_check
          %p454 = pneg %p60
        $region140: #{block_forward.1} parent=137 // pred_check_branch
          %456 = sbr.rel (%p454) target = $region142
        $region141: #{block_forward.1} parent=137 // pred_region
          _
        $region142: #{block_forward.1} parent=137 // pred_fallthru
          _
        %s457 = sand.u32 %s75, 1
        %s458 = sand.u32 %s75, 1
        %s459 = smul.addr %s458, 64
        %s460 = scalar_lea.vmem [#allocation4], %s459
        // Predicated region
        $region143: #{block_forward.1} parent=137 // pred_check
          %p461 = pneg %p88
        $region144: #{block_forward.1} parent=137 // pred_check_branch
          %463 = sbr.rel (%p461) target = $region146
        $region145: #{block_forward.1} parent=137 // pred_region
          _
        $region146: #{block_forward.1} parent=137 // pred_fallthru
          _
        %s464 = sand.u32 %s103, 1
        %s465 = sand.u32 %s103, 1
        %s466 = smul.addr %s465, 128
        %s467 = scalar_lea.vmem [#allocation5], %s466
        // Predicated region
        $region147: #{block_forward.1} parent=137 // pred_check
          %p468 = pneg %p116
        $region148: #{block_forward.1} parent=137 // pred_check_branch
          %470 = sbr.rel (%p468) target = $region150
        $region149: #{block_forward.1} parent=137 // pred_region
          _
        $region150: #{block_forward.1} parent=137 // pred_fallthru
          _
        %s471 = sand.u32 %s47, 1
        %s472 = sand.u32 %s47, 1
        %s473 = smul.addr %s472, 64
        %s474 = scalar_lea.vmem [#allocation3], %s473
        %p475 = pneg %p60
        %p476 = pneg %p57
        %s477 = sand.u32 %s75, 1
        %s478 = sand.u32 %s75, 1
        %s479 = smul.addr %s478, 64
        %s480 = scalar_lea.vmem [#allocation4], %s479
        %p481 = pneg %p88
        %p482 = pneg %p85
        %s483 = sand.u32 %s103, 1
        %s484 = sand.u32 %s103, 1
        %s485 = smul.addr %s484, 128
        %s486 = scalar_lea.vmem [#allocation5], %s485
        %p487 = pneg %p116
        %p488 = pneg %p113
        %p489 = scmp.lt.s32.totalorder %s24, 1
        %s490 = scalar_select %p489, %s24, 1
        %s491 = scalar_lea.vmem %s3, %s490
        %p492 = pneg %p142
        %p493 = pneg %p139
        %p494 = pneg %p170
        %p495 = pneg %p167
        %s496 = sand.u32 %s157, 1
        %s497 = scalar_lea.sflag [#allocation7], %s496
        %s498 = sand.u32 %s157, 1
        %s499 = smul.addr %s498, 64
        %s500 = scalar_lea.vmem [#allocation6], %s499
        %s501 = smul.u32 8, %s23
        %s502 = smul.u32 8, %s23
        %s503 = smul.u32 16, %s25
        %p504 = scmp.lt.s32.totalorder %s24, 1
        %s505 = scalar_select %p504, %s24, 1
        %s506 = scalar_lea.vmem %s3, %s505
        %s507 = smul.u32 8, %s23
        %p508 = scmp.eq.s32.totalorder %s25, 0
        // Predicated region
        $region151: #{block_forward.1} parent=137 // pred_check
          %p509 = pneg %p508
        $region152: #{block_forward.1} parent=137 // pred_check_branch
          %511 = sbr.rel (%p509) target = $region154
        $region153: #{block_forward.1} parent=137 // pred_region
          %512 = vst [vmem:[#allocation2] sm:$0xff] 0.0
          %513 = vst [vmem:[#allocation2 + $0x8] sm:$0xff] 0.0
          %514 = vst [vmem:[#allocation2 + $0x10] sm:$0xff] 0.0
          %515 = vst [vmem:[#allocation2 + $0x18] sm:$0xff] 0.0
          %516 = vst [vmem:[#allocation2 + $0x20] sm:$0xff] 0.0
          %517 = vst [vmem:[#allocation2 + $0x28] sm:$0xff] 0.0
          %518 = vst [vmem:[#allocation2 + $0x30] sm:$0xff] 0.0
          %519 = vst [vmem:[#allocation2 + $0x38] sm:$0xff] 0.0
        $region154: #{block_forward.1} parent=137 // pred_fallthru
          _
        %v520 = vld [vmem:[#allocation2] sm:$0xff]
        %v521 = vld [vmem:[#allocation2 + $0x8] sm:$0xff]
        %v522 = vld [vmem:[#allocation2 + $0x10] sm:$0xff]
        %v523 = vld [vmem:[#allocation2 + $0x18] sm:$0xff]
        %v524 = vld [vmem:[#allocation2 + $0x20] sm:$0xff]
        %v525 = vld [vmem:[#allocation2 + $0x28] sm:$0xff]
        %v526 = vld [vmem:[#allocation2 + $0x30] sm:$0xff]
        %v527 = vld [vmem:[#allocation2 + $0x38] sm:$0xff]
        %v528 = vld [vmem:[%s453] sm:$0xff]
        %v529 = vld [vmem:[%s453 + $0x8] sm:$0xff]
        %v530 = vld [vmem:[%s453 + $0x10] sm:$0xff]
        %v531 = vld [vmem:[%s453 + $0x18] sm:$0xff]
        %v532 = vld [vmem:[%s453 + $0x20] sm:$0xff]
        %v533 = vld [vmem:[%s453 + $0x28] sm:$0xff]
        %v534 = vld [vmem:[%s453 + $0x30] sm:$0xff]
        %v535 = vld [vmem:[%s453 + $0x38] sm:$0xff]
        %v536 = vld [vmem:[%s467] sm:$0xff]
        %v537 = vld [vmem:[%s467 + $0x8] sm:$0xff]
        %v538 = vld [vmem:[%s467 + $0x10] sm:$0xff]
        %v539 = vld [vmem:[%s467 + $0x18] sm:$0xff]
        %v540 = vld [vmem:[%s467 + $0x20] sm:$0xff]
        %v541 = vld [vmem:[%s467 + $0x28] sm:$0xff]
        %v542 = vld [vmem:[%s467 + $0x30] sm:$0xff]
        %v543 = vld [vmem:[%s467 + $0x38] sm:$0xff]
        %v544 = vld [vmem:[%s467 + $0x40] sm:$0xff]
        %v545 = vld [vmem:[%s467 + $0x48] sm:$0xff]
        %v546 = vld [vmem:[%s467 + $0x50] sm:$0xff]
        %v547 = vld [vmem:[%s467 + $0x58] sm:$0xff]
        %v548 = vld [vmem:[%s467 + $0x60] sm:$0xff]
        %v549 = vld [vmem:[%s467 + $0x68] sm:$0xff]
        %v550 = vld [vmem:[%s467 + $0x70] sm:$0xff]
        %v551 = vld [vmem:[%s467 + $0x78] sm:$0xff]
        %552 = vmatprep.subr.mxu0 0.0
        %553 = vmatpush1.msra.mxu0 %v536
        %554 = vmatprep.subr.mxu0 0.0
        %555 = vmatpush1.msra.mxu0 %v537
        %556 = vmatprep.subr.mxu0 0.0
        %557 = vmatpush1.msra.mxu0 %v538
        %558 = vmatprep.subr.mxu0 0.0
        %559 = vmatpush1.msra.mxu0 %v539
        %560 = vmatprep.subr.mxu0 0.0
        %561 = vmatpush1.msra.mxu0 %v540
        %562 = vmatprep.subr.mxu0 0.0
        %563 = vmatpush1.msra.mxu0 %v541
        %564 = vmatprep.subr.mxu0 0.0
        %565 = vmatpush1.msra.mxu0 %v542
        %566 = vmatprep.subr.mxu0 0.0
        %567 = vmatpush1.msra.mxu0 %v543
        %568 = vmatprep.subr.mxu0 0.0
        %569 = vmatpush1.msra.mxu0 %v544
        %570 = vmatprep.subr.mxu0 0.0
        %571 = vmatpush1.msra.mxu0 %v545
        %572 = vmatprep.subr.mxu0 0.0
        %573 = vmatpush1.msra.mxu0 %v546
        %574 = vmatprep.subr.mxu0 0.0
        %575 = vmatpush1.msra.mxu0 %v547
        %576 = vmatprep.subr.mxu0 0.0
        %577 = vmatpush1.msra.mxu0 %v548
        %578 = vmatprep.subr.mxu0 0.0
        %579 = vmatpush1.msra.mxu0 %v549
        %580 = vmatprep.subr.mxu0 0.0
        %581 = vmatpush1.msra.mxu0 %v550
        %582 = vmatprep.subr.mxu0 0.0
        %583 = vmatpush1.msra.mxu0 %v551
        %584 = vmatprep.subr.mxu0 0.0
        %585 = vmatpush1.msra.mxu0 0.0
        %586 = vmatprep.subr.mxu0 0.0
        %587 = vmatpush1.msra.mxu0 0.0
        %588 = vmatprep.subr.mxu0 0.0
        %589 = vmatpush1.msra.mxu0 0.0
        %590 = vmatprep.subr.mxu0 0.0
        %591 = vmatpush1.msra.mxu0 0.0
        %592 = vmatprep.subr.mxu0 0.0
        %593 = vmatpush1.msra.mxu0 0.0
        %594 = vmatprep.subr.mxu0 0.0
        %595 = vmatpush1.msra.mxu0 0.0
        %596 = vmatprep.subr.mxu0 0.0
        %597 = vmatpush1.msra.mxu0 0.0
        %598 = vmatprep.subr.mxu0 0.0
        %599 = vmatpush1.msra.mxu0 0.0
        %600 = vmatprep.subr.mxu0 0.0
        %601 = vmatpush1.msra.mxu0 0.0
        %602 = vmatprep.subr.mxu0 0.0
        %603 = vmatpush1.msra.mxu0 0.0
        %604 = vmatprep.subr.mxu0 0.0
        %605 = vmatpush1.msra.mxu0 0.0
        %606 = vmatprep.subr.mxu0 0.0
        %607 = vmatpush1.msra.mxu0 0.0
        %608 = vmatprep.subr.mxu0 0.0
        %609 = vmatpush1.msra.mxu0 0.0
        %610 = vmatprep.subr.mxu0 0.0
        %611 = vmatpush1.msra.mxu0 0.0
        %612 = vmatprep.subr.mxu0 0.0
        %613 = vmatpush1.msra.mxu0 0.0
        %614 = vmatprep.subr.mxu0 0.0
        %615 = vmatpush1.msra.mxu0 0.0
        %616 = vmatprep.mubr.f32.mxu0 0.0
        %617 = vmatmul.mubr.f32.gmra.mrb[0].mxu0 %v528
        %v618 = vpop.f32.mrb[0].mxu0
        %v619 = vadd.f32 0.0, %v618
        %v620 = vpop.f32.mrb[0].mxu0
        %621 = vmatprep.mubr.f32.mxu0 0.0
        %622 = vmatmul.mubr.f32.gmra.mrb[0].mxu0 %v529
        %v623 = vpop.f32.mrb[0].mxu0
        %v624 = vadd.f32 0.0, %v623
        %v625 = vpop.f32.mrb[0].mxu0
        %626 = vmatprep.mubr.f32.mxu0 0.0
        %627 = vmatmul.mubr.f32.gmra.mrb[0].mxu0 %v530
        %v628 = vpop.f32.mrb[0].mxu0
        %v629 = vadd.f32 0.0, %v628
        %v630 = vpop.f32.mrb[0].mxu0
        %631 = vmatprep.mubr.f32.mxu0 0.0
        %632 = vmatmul.mubr.f32.gmra.mrb[0].mxu0 %v531
        %v633 = vpop.f32.mrb[0].mxu0
        %v634 = vadd.f32 0.0, %v633
        %v635 = vpop.f32.mrb[0].mxu0
        %636 = vmatprep.mubr.f32.mxu0 0.0
        %637 = vmatmul.mubr.f32.gmra.mrb[0].mxu0 %v532
        %v638 = vpop.f32.mrb[0].mxu0
        %v639 = vadd.f32 0.0, %v638
        %v640 = vpop.f32.mrb[0].mxu0
        %641 = vmatprep.mubr.f32.mxu0 0.0
        %642 = vmatmul.mubr.f32.gmra.mrb[0].mxu0 %v533
        %v643 = vpop.f32.mrb[0].mxu0
        %v644 = vadd.f32 0.0, %v643
        %v645 = vpop.f32.mrb[0].mxu0
        %646 = vmatprep.mubr.f32.mxu0 0.0
        %647 = vmatmul.mubr.f32.gmra.mrb[0].mxu0 %v534
        %v648 = vpop.f32.mrb[0].mxu0
        %v649 = vadd.f32 0.0, %v648
        %v650 = vpop.f32.mrb[0].mxu0
        %651 = vmatprep.mubr.f32.mxu0 0.0
        %652 = vmatmul.mubr.f32.gmra.mrb[0].mxu0 %v535
        %v653 = vpop.f32.mrb[0].mxu0
        %v654 = vadd.f32 0.0, %v653
        %v655 = vpop.f32.mrb[0].mxu0
        %656 = vdwg.mxu0
        %v657 = vadd.f32 %v520, %v619
        %v658 = vadd.f32 %v521, %v624
        %v659 = vadd.f32 %v522, %v629
        %v660 = vadd.f32 %v523, %v634
        %v661 = vadd.f32 %v524, %v639
        %v662 = vadd.f32 %v525, %v644
        %v663 = vadd.f32 %v526, %v649
        %v664 = vadd.f32 %v527, %v654
        %665 = vst [vmem:[#allocation2] sm:$0xff] %v657
        %666 = vst [vmem:[#allocation2 + $0x8] sm:$0xff] %v658
        %667 = vst [vmem:[#allocation2 + $0x10] sm:$0xff] %v659
        %668 = vst [vmem:[#allocation2 + $0x18] sm:$0xff] %v660
        %669 = vst [vmem:[#allocation2 + $0x20] sm:$0xff] %v661
        %670 = vst [vmem:[#allocation2 + $0x28] sm:$0xff] %v662
        %671 = vst [vmem:[#allocation2 + $0x30] sm:$0xff] %v663
        %672 = vst [vmem:[#allocation2 + $0x38] sm:$0xff] %v664
        %p673 = scmp.eq.s32.totalorder %s25, 1
        // Predicated region
        $region155: #{block_forward.1} parent=137 // pred_check
          %p674 = pneg %p673
        $region156: #{block_forward.1} parent=137 // pred_check_branch
          %676 = sbr.rel (%p674) target = $region158
        $region157: #{block_forward.1} parent=137 // pred_region
          %v677 = vld [vmem:[#allocation2] sm:$0xff]
          %v678 = vld [vmem:[#allocation2 + $0x8] sm:$0xff]
          %v679 = vld [vmem:[#allocation2 + $0x10] sm:$0xff]
          %v680 = vld [vmem:[#allocation2 + $0x18] sm:$0xff]
          %v681 = vld [vmem:[#allocation2 + $0x20] sm:$0xff]
          %v682 = vld [vmem:[#allocation2 + $0x28] sm:$0xff]
          %v683 = vld [vmem:[#allocation2 + $0x30] sm:$0xff]
          %v684 = vld [vmem:[#allocation2 + $0x38] sm:$0xff]
          %v685 = vld [vmem:[%s506] sm:$0x1]
          %v687 = vlaneseq
          %v688 = vshrl.u32 %v687, 7
          %v689 = vsub.s32 0, %v688
          %v690 = vrot.slane %v685, %v689
          %v692 = vadd.f32 %v677, %v690
          %v693 = vadd.f32 %v678, %v690
          %v694 = vadd.f32 %v679, %v690
          %v695 = vadd.f32 %v680, %v690
          %v696 = vadd.f32 %v681, %v690
          %v697 = vadd.f32 %v682, %v690
          %v698 = vadd.f32 %v683, %v690
          %v699 = vadd.f32 %v684, %v690
          %v700 = vmul.f32 %v692, 0.5
          %v701 = vmul.f32 %v693, 0.5
          %v702 = vmul.f32 %v694, 0.5
          %v703 = vmul.f32 %v695, 0.5
          %v704 = vmul.f32 %v696, 0.5
          %v705 = vmul.f32 %v697, 0.5
          %v706 = vmul.f32 %v698, 0.5
          %v707 = vmul.f32 %v699, 0.5
          %v708 = vmul.f32 %v692, 0.70710677
          %v709 = vmul.f32 %v693, 0.70710677
          %v710 = vmul.f32 %v694, 0.70710677
          %v711 = vmul.f32 %v695, 0.70710677
          %v712 = vmul.f32 %v696, 0.70710677
          %v713 = vmul.f32 %v697, 0.70710677
          %v714 = vmul.f32 %v698, 0.70710677
          %v715 = vmul.f32 %v699, 0.70710677
          %v716 = verf.f32.pop %v708
          %v717 = verf.f32.pop %v709
          %v718 = verf.f32.pop %v710
          %v719 = verf.f32.pop %v711
          %v720 = verf.f32.pop %v712
          %v721 = verf.f32.pop %v713
          %v722 = verf.f32.pop %v714
          %v723 = verf.f32.pop %v715
          %v724 = vadd.f32 %v716, 1.0
          %v725 = vadd.f32 %v717, 1.0
          %v726 = vadd.f32 %v718, 1.0
          %v727 = vadd.f32 %v719, 1.0
          %v728 = vadd.f32 %v720, 1.0
          %v729 = vadd.f32 %v721, 1.0
          %v730 = vadd.f32 %v722, 1.0
          %v731 = vadd.f32 %v723, 1.0
          %v732 = vmul.f32 %v700, %v724
          %v733 = vmul.f32 %v701, %v725
          %v734 = vmul.f32 %v702, %v726
          %v735 = vmul.f32 %v703, %v727
          %v736 = vmul.f32 %v704, %v728
          %v737 = vmul.f32 %v705, %v729
          %v738 = vmul.f32 %v706, %v730
          %v739 = vmul.f32 %v707, %v731
          %v740 = vld [vmem:[%s460] sm:$0xff]
          %v741 = vld [vmem:[%s460 + $0x8] sm:$0xff]
          %v742 = vld [vmem:[%s460 + $0x10] sm:$0xff]
          %v743 = vld [vmem:[%s460 + $0x18] sm:$0xff]
          %v744 = vld [vmem:[%s460 + $0x20] sm:$0xff]
          %v745 = vld [vmem:[%s460 + $0x28] sm:$0xff]
          %v746 = vld [vmem:[%s460 + $0x30] sm:$0xff]
          %v747 = vld [vmem:[%s460 + $0x38] sm:$0xff]
          %v748 = vadd.f32 %v740, %v732
          %v749 = vadd.f32 %v741, %v733
          %v750 = vadd.f32 %v742, %v734
          %v751 = vadd.f32 %v743, %v735
          %v752 = vadd.f32 %v744, %v736
          %v753 = vadd.f32 %v745, %v737
          %v754 = vadd.f32 %v746, %v738
          %v755 = vadd.f32 %v747, %v739
          %756 = vst [vmem:[%s500] sm:$0xff] %v748
          %757 = vst [vmem:[%s500 + $0x8] sm:$0xff] %v749
          %758 = vst [vmem:[%s500 + $0x10] sm:$0xff] %v750
          %759 = vst [vmem:[%s500 + $0x18] sm:$0xff] %v751
          %760 = vst [vmem:[%s500 + $0x20] sm:$0xff] %v752
          %761 = vst [vmem:[%s500 + $0x28] sm:$0xff] %v753
          %762 = vst [vmem:[%s500 + $0x30] sm:$0xff] %v754
          %763 = vst [vmem:[%s500 + $0x38] sm:$0xff] %v755
        $region158: #{block_forward.1} parent=137 // pred_fallthru
          _
        %s764 = sand.u32 %s157, 1
        %s765 = scalar_lea.sflag [#allocation7], %s764
        %s766 = sand.u32 %s157, 1
        %s767 = smul.addr %s766, 64
        %s768 = scalar_lea.vmem [#allocation6], %s767
        // Predicated region
        $region159: #{block_forward.1} parent=137 // pred_check
          %p769 = pneg %p167
        $region160: #{block_forward.1} parent=137 // pred_check_branch
          %771 = sbr.rel (%p769) target = $region162
        $region161: #{block_forward.1} parent=137 // pred_region
          %s772 = smul.u32 8, %s23
          %s774 = ssub.s32 1024, 1024
          %775 = vsyncadd %s765, %s774
          %s776 = smul.addr %s772, 2
          %s777 = sadd.s32 %s24, %s776
          %s778 = smul.addr %s777, 128
          %s779 = scalar_lea.hbm %s4, %s778
          %s780 = sshll.u32 %s768, 4
          %s781 = int_to_ptr.vmem [resolvable:$true] %s780
          %786 = dma.vmem_to_hbm [thread:$0]  %s781, 1024, %s779, %s765, 128, 256, 8
        $region162: #{block_forward.1} parent=137 // pred_fallthru
          _
      $region138: #{block_forward.1} parent=5 // pred_fallthru
        _
      %p787 = scmp.le.s32.totalorder 2, %s13
      // Predicated region
      $region163: #{block_forward.1} parent=5 // pred_check
        %p788 = pneg %p787
      $region164: #{block_forward.1} parent=5 // pred_check_branch
        %790 = sbr.rel (%p788) target = $region166
      $region165: #{block_forward.1} parent=5 // pred_region
        %s791 = ssub.s32 %s13, 2
        // Predicated region
        $region167: #{block_forward.1} parent=165 // pred_check
          %p792 = pneg %p173
        $region168: #{block_forward.1} parent=165 // pred_check_branch
          %794 = sbr.rel (%p792) target = $region170
        $region169: #{block_forward.1} parent=165 // pred_region
          %s795 = sand.u32 %s158, 1
          %s796 = scalar_lea.sflag [#allocation7], %s795
          %s797 = sand.u32 %s158, 1
          %s798 = smul.addr %s797, 64
          %s799 = scalar_lea.vmem [#allocation6], %s798
          %800 = dma.done %s796, 1024
        $region170: #{block_forward.1} parent=165 // pred_fallthru
          _
      $region166: #{block_forward.1} parent=5 // pred_fallthru
        _
    $region6: #{block_forward.1} parent=1 // loop_footer
      %s17 = sadd.s32 1, %s13
    $region7: #{block_forward.1} parent=1 // loop_footer_branch
      %12 = sbr.rel target = $region3
    $region8: #{block_forward.1} parent=1 // loop_exit
      _
    %801 = vsyncpa [#allocation7], 1
    %s802 = scalar_lea.sflag [#allocation7], 1
    %803 = vsyncpa %s802, 1

</llo_original>
